<compile_context>
chip_gen: v7x
topology: tpu7x:2x2x1
jax: 0.10.0
libtpu: 0.0.40
codegen_flags: <defaults>
</compile_context>

<pallas_src>
import functools

import jax
import jax.numpy as jnp
from jax.experimental import pallas as pl
from jax.experimental.pallas import tpu as pltpu

LANES = 128
SUBLANES = 8
TILE_ROWS = 1024  # 1024 * 128 * 4 B = 512 KiB per input per grid step


def _weighted_sq_partial_kernel(out_ref, tgt_ref, price_ref, part_ref, *,
                                tile_rows):
    # Hot path: pure elementwise VPU work.  Upcast after load so
    # lower-precision (e.g. bf16) inputs keep the HBM read narrow while the
    # accumulation stays f32.
    o = out_ref[...].astype(jnp.float32)
    t = tgt_ref[...].astype(jnp.float32)
    p = price_ref[...].astype(jnp.float32)
    d = (o - t) * p
    sq = d * d
    # Fold (tile_rows, 128) -> (8, 128): the reshape keeps the (8, 128) vreg
    # tile intact (free view) and the axis-0 reduction is tile_rows/8 vector
    # adds -- no XLU cross-lane work in the hot loop.
    part = sq.reshape(tile_rows // SUBLANES, SUBLANES, LANES).sum(axis=0)
    part_ref[...] = part.reshape(1, SUBLANES, LANES)


def custom_loss(output, target, price):
    """Pallas implementation of CustomLoss.forward(output, target, price)."""
    output = jnp.squeeze(output)
    target = jnp.asarray(target)
    price = jnp.asarray(price)

    n = output.size

    # Tile choice: biggest tile that fits VMEM when there is enough data,
    # otherwise a single tile rounded up to a multiple of 8 sublanes.
    rows_min = -(-n // LANES)                        # ceil(n / 128)
    if rows_min >= TILE_ROWS:
        tile_rows = TILE_ROWS
    else:
        tile_rows = -(-rows_min // SUBLANES) * SUBLANES
    rows = -(-rows_min // tile_rows) * tile_rows     # pad rows to tile multiple
    padded_n = rows * LANES
    num_tiles = rows // tile_rows

    def prep(x):
        x = x.reshape(-1)
        if padded_n != n:
            x = jnp.pad(x, (0, padded_n - n))        # zeros add 0 to the sum
        return x.reshape(rows, LANES)

    o2, t2, p2 = prep(output), prep(target), prep(price)

    vec_spec = pl.BlockSpec((tile_rows, LANES), lambda i: (i, 0))

    bytes_accessed = int(
        o2.size * o2.dtype.itemsize
        + t2.size * t2.dtype.itemsize
        + p2.size * p2.dtype.itemsize
        + num_tiles * SUBLANES * LANES * 4
    )

    partials = pl.pallas_call(
        functools.partial(_weighted_sq_partial_kernel, tile_rows=tile_rows),
        out_shape=jax.ShapeDtypeStruct((num_tiles, SUBLANES, LANES),
                                       jnp.float32),
        grid_spec=pltpu.PrefetchScalarGridSpec(
            num_scalar_prefetch=0,
            grid=(num_tiles,),
            in_specs=[vec_spec, vec_spec, vec_spec],
            out_specs=pl.BlockSpec((1, SUBLANES, LANES), lambda i: (i, 0, 0)),
        ),
        compiler_params=pltpu.CompilerParams(
            # Each grid step writes its own partial block -> no carried state,
            # so the axis is fully parallel (enables v7x megacore sharding).
            dimension_semantics=("parallel",),
        ),
        cost_estimate=pl.CostEstimate(
            flops=4 * padded_n,
            transcendentals=0,
            bytes_accessed=bytes_accessed,
        ),
    )(o2, t2, p2)

    # Tiny final reduction (num_tiles * 4 KiB) + mean in XLA.  Zero padding
    # contributes nothing to the sum; divide by the true element count.
    return jnp.sum(partials) / jnp.float32(n)


if __name__ == "__main__":
    key = jax.random.PRNGKey(0)
    k1, k2, k3 = jax.random.split(key, 3)

    N = 4096  # number of samples (price predictions)
    output = jax.random.normal(k1, (N, 1), dtype=jnp.float32)       # model output [N,1]
    target = jax.random.normal(k2, (N,), dtype=jnp.float32)         # target prices
    price = jax.random.uniform(k3, (N,), dtype=jnp.float32) + 0.5   # weights

    loss = jax.block_until_ready(custom_loss(output, target, price))

    # reference check in plain JAX (matches torch: mse(output*price, target*price))
    ref = jnp.mean(((jnp.squeeze(output) - target) * price) ** 2)
    assert jnp.allclose(loss, ref, rtol=1e-5, atol=1e-6), (loss, ref)

    print("KERNEL_OK")
</pallas_src>

<mosaic_0001>
module attributes {stable_mosaic.version = 11 : i64} {
  func.func @_weighted_sq_partial_kernel(%arg0: i32, %arg1: memref<32x128xf32, #tpu.memory_space<vmem>>, %arg2: memref<32x128xf32, #tpu.memory_space<vmem>>, %arg3: memref<32x128xf32, #tpu.memory_space<vmem>>, %arg4: memref<1x8x128xf32, #tpu.memory_space<vmem>>) attributes {dimension_semantics = [#tpu.dimension_semantics<parallel>], iteration_bounds = array<i64: 1>, scalar_prefetch = 0 : i64, scratch_operands = 0 : i64, tpu.core_type = #tpu.core_type<tc>, window_params = [{transform_indices = @transform_0, window_bounds = array<i64: 32, 128>}, {transform_indices = @transform_1, window_bounds = array<i64: 32, 128>}, {transform_indices = @transform_2, window_bounds = array<i64: 32, 128>}, {transform_indices = @transform_3, window_bounds = array<i64: 1, 8, 128>}]} {
    %c0 = arith.constant 0 : index
    %c0_0 = arith.constant 0 : index
    %0 = vector.load %arg1[%c0, %c0_0] : memref<32x128xf32, #tpu.memory_space<vmem>>, vector<32x128xf32>
    %c0_1 = arith.constant 0 : index
    %c0_2 = arith.constant 0 : index
    %1 = vector.load %arg2[%c0_1, %c0_2] : memref<32x128xf32, #tpu.memory_space<vmem>>, vector<32x128xf32>
    %c0_3 = arith.constant 0 : index
    %c0_4 = arith.constant 0 : index
    %2 = vector.load %arg3[%c0_3, %c0_4] : memref<32x128xf32, #tpu.memory_space<vmem>>, vector<32x128xf32>
    %3 = arith.subf %0, %1 : vector<32x128xf32>
    %4 = arith.mulf %3, %2 : vector<32x128xf32>
    %5 = arith.mulf %4, %4 : vector<32x128xf32>
    %6 = vector.shape_cast %5 : vector<32x128xf32> to vector<4x8x128xf32>
    %cst = arith.constant dense<0.000000e+00> : vector<8x128xf32>
    %7 = vector.multi_reduction <add>, %6, %cst [0] : vector<4x8x128xf32> to vector<8x128xf32>
    %8 = vector.shape_cast %7 : vector<8x128xf32> to vector<1x8x128xf32>
    %c0_5 = arith.constant 0 : index
    %c0_6 = arith.constant 0 : index
    %c0_7 = arith.constant 0 : index
    %9 = vector.load %arg4[%c0_5, %c0_6, %c0_7] : memref<1x8x128xf32, #tpu.memory_space<vmem>>, vector<1x8x128xf32>
    tpu.vector_store %arg4[%c0_5, %c0_6, %c0_7], %8 {strides = array<i32>} : memref<1x8x128xf32, #tpu.memory_space<vmem>>, vector<1x8x128xf32>,
    return
  }
  func.func @transform_0(%arg0: i32) -> (i32, i32) {
    %c0_i32 = arith.constant 0 : i32
    %c0_i32_0 = arith.constant 0 : i32
    return %arg0, %c0_i32 : i32, i32
  }
  func.func @transform_1(%arg0: i32) -> (i32, i32) {
    %c0_i32 = arith.constant 0 : i32
    %c0_i32_0 = arith.constant 0 : i32
    return %arg0, %c0_i32 : i32, i32
  }
  func.func @transform_2(%arg0: i32) -> (i32, i32) {
    %c0_i32 = arith.constant 0 : i32
    %c0_i32_0 = arith.constant 0 : i32
    return %arg0, %c0_i32 : i32, i32
  }
  func.func @transform_3(%arg0: i32) -> (i32, i32, i32) {
    %c0_i32 = arith.constant 0 : i32
    %c0_i32_0 = arith.constant 0 : i32
    %c0_i32_1 = arith.constant 0 : i32
    return %arg0, %c0_i32, %c0_i32_0 : i32, i32, i32
  }
}

</mosaic_0001>

<llo_original>
// kernel: tpu_custom_call.1
$region0: #{tpu_custom_call.1}
  #allocation0 [shape = 'u32[]', space=smem, size = 0x4, offset = 0x4, fixed_abs, tag = 'smem constant byte address 0x4 - core index']
  #allocation1 [shape = 'u32[144,128]{1,0:T(1,128)}', space=vmem, size = 0x12000, scoped, tag = 'internal scratch']
  %s0 = inlined_call_operand.hbm [shape: f32[32,128], index: 0, kind: input, shape index: {}]
  %s1 = inlined_call_operand.hbm [shape: f32[32,128], index: 1, kind: input, shape index: {}]
  %s2 = inlined_call_operand.hbm [shape: f32[32,128], index: 2, kind: input, shape index: {}]
  %s3 = inlined_call_operand.hbm [shape: f32[1,8,128], index: 3, kind: output, shape index: {}]
  %s4 = sld [smem:[#allocation0]]
  $region34: #{tpu_custom_call.1} parent=0
    _
  %s6 = ssub.s32 1, %s4
  %s7 = scalar_select 0, %s6, %s4
  $region1: #{tpu_custom_call.1} parent=0
    #allocation2 [shape = 'u8[16384]{0}', space=vmem, size = 0x4000, scoped, tag = 'input window, operand 0, single buffered']
    #allocation3 [shape = 's32[1]{0}', space=sflag, size = 0x4, scoped, tag = 'scoped memory for tpu_custom_call.1']
    #allocation4 [shape = 's32[1]{0}', space=sflag, size = 0x4, scoped, tag = 'scoped memory for tpu_custom_call.1']
    #allocation5 [shape = 'u8[16384]{0}', space=vmem, size = 0x4000, scoped, tag = 'input window, operand 1, single buffered']
    #allocation6 [shape = 's32[1]{0}', space=sflag, size = 0x4, scoped, tag = 'scoped memory for tpu_custom_call.1']
    #allocation7 [shape = 'u8[16384]{0}', space=vmem, size = 0x4000, scoped, tag = 'input window, operand 2, single buffered']
    #allocation8 [shape = 'u8[4096]{0}', space=vmem, size = 0x1000, scoped, tag = 'output window, operand 0, single buffered']
    %8 = vsyncpa [#allocation3], 0
    %9 = vsyncpa [#allocation6], 0
    %10 = vsyncpa [#allocation4], 0
    // Predicated region
    $region2: #{tpu_custom_call.1} parent=1 // pred_check
      _
    $region3: #{tpu_custom_call.1} parent=1 // pred_check_branch
      %12 = sbr.rel (0) target = $region5
    $region4: #{tpu_custom_call.1} parent=1 // pred_region
      %s14 = ssub.s32 512, 512
      %15 = vsyncadd [#allocation3], %s14
      %s16 = sshll.u32 [#allocation2], 4
      %s17 = int_to_ptr.vmem [resolvable:$true] %s16
      %22 = dma.hbm_to_vmem [thread:$0]  %s0, 512, %s17, [#allocation3], 128, 128, 8
    $region5: #{tpu_custom_call.1} parent=1 // pred_fallthru
      _
    // Predicated region
    $region6: #{tpu_custom_call.1} parent=1 // pred_check
      _
    $region7: #{tpu_custom_call.1} parent=1 // pred_check_branch
      %24 = sbr.rel (0) target = $region9
    $region8: #{tpu_custom_call.1} parent=1 // pred_region
      %s26 = ssub.s32 512, 512
      %27 = vsyncadd [#allocation6], %s26
      %s28 = sshll.u32 [#allocation5], 4
      %s29 = int_to_ptr.vmem [resolvable:$true] %s28
      %34 = dma.hbm_to_vmem [thread:$0]  %s1, 512, %s29, [#allocation6], 128, 128, 8
    $region9: #{tpu_custom_call.1} parent=1 // pred_fallthru
      _
    // Predicated region
    $region10: #{tpu_custom_call.1} parent=1 // pred_check
      _
    $region11: #{tpu_custom_call.1} parent=1 // pred_check_branch
      %36 = sbr.rel (0) target = $region13
    $region12: #{tpu_custom_call.1} parent=1 // pred_region
      %s38 = ssub.s32 512, 512
      %39 = vsyncadd [#allocation6], %s38
      %s40 = sshll.u32 [#allocation7], 4
      %s41 = int_to_ptr.vmem [resolvable:$true] %s40
      %46 = dma.hbm_to_vmem [thread:$0]  %s2, 512, %s41, [#allocation6], 128, 128, 8
    $region13: #{tpu_custom_call.1} parent=1 // pred_fallthru
      _
    // Predicated region
    $region14: #{tpu_custom_call.1} parent=1 // pred_check
      _
    $region15: #{tpu_custom_call.1} parent=1 // pred_check_branch
      %48 = sbr.rel (0) target = $region17
    $region16: #{tpu_custom_call.1} parent=1 // pred_region
      %49 = dma.done [#allocation3], 512
    $region17: #{tpu_custom_call.1} parent=1 // pred_fallthru
      _
    // Predicated region
    $region18: #{tpu_custom_call.1} parent=1 // pred_check
      _
    $region19: #{tpu_custom_call.1} parent=1 // pred_check_branch
      %51 = sbr.rel (0) target = $region21
    $region20: #{tpu_custom_call.1} parent=1 // pred_region
      %52 = dma.done [#allocation6], 512
    $region21: #{tpu_custom_call.1} parent=1 // pred_fallthru
      _
    // Predicated region
    $region22: #{tpu_custom_call.1} parent=1 // pred_check
      _
    $region23: #{tpu_custom_call.1} parent=1 // pred_check_branch
      %54 = sbr.rel (0) target = $region25
    $region24: #{tpu_custom_call.1} parent=1 // pred_region
      %55 = dma.done [#allocation6], 512
    $region25: #{tpu_custom_call.1} parent=1 // pred_fallthru
      _
    %v56 = vld [vmem:[#allocation2] sm:$0xff]
    %v57 = vld [vmem:[#allocation2 + $0x8] sm:$0xff]
    %v58 = vld [vmem:[#allocation2 + $0x10] sm:$0xff]
    %v59 = vld [vmem:[#allocation2 + $0x18] sm:$0xff]
    %v60 = vld [vmem:[#allocation5] sm:$0xff]
    %v61 = vld [vmem:[#allocation5 + $0x8] sm:$0xff]
    %v62 = vld [vmem:[#allocation5 + $0x10] sm:$0xff]
    %v63 = vld [vmem:[#allocation5 + $0x18] sm:$0xff]
    %v64 = vld [vmem:[#allocation7] sm:$0xff]
    %v65 = vld [vmem:[#allocation7 + $0x8] sm:$0xff]
    %v66 = vld [vmem:[#allocation7 + $0x10] sm:$0xff]
    %v67 = vld [vmem:[#allocation7 + $0x18] sm:$0xff]
    %v68 = vsub.f32 %v56, %v60
    %v69 = vsub.f32 %v57, %v61
    %v70 = vsub.f32 %v58, %v62
    %v71 = vsub.f32 %v59, %v63
    %v72 = vmul.f32 %v68, %v64
    %v73 = vmul.f32 %v69, %v65
    %v74 = vmul.f32 %v70, %v66
    %v75 = vmul.f32 %v71, %v67
    %v76 = vmul.f32 %v72, %v72
    %v77 = vmul.f32 %v73, %v73
    %v78 = vmul.f32 %v74, %v74
    %v79 = vmul.f32 %v75, %v75
    %v80 = vadd.f32 %v76, %v77
    %v81 = vadd.f32 %v80, %v78
    %v82 = vadd.f32 %v81, %v79
    %83 = vst [vmem:[#allocation8] sm:$0xff] %v82
    // Predicated region
    $region26: #{tpu_custom_call.1} parent=1 // pred_check
      _
    $region27: #{tpu_custom_call.1} parent=1 // pred_check_branch
      %85 = sbr.rel (0) target = $region29
    $region28: #{tpu_custom_call.1} parent=1 // pred_region
      %s87 = ssub.s32 128, 128
      %88 = vsyncadd [#allocation4], %s87
      %s90 = sshll.u32 [#allocation8], 4
      %s91 = int_to_ptr.vmem [resolvable:$true] %s90
      %93 = dma.vmem_to_hbm [thread:$0]  %s91, 128, %s3, [#allocation4]
    $region29: #{tpu_custom_call.1} parent=1 // pred_fallthru
      _
    // Predicated region
    $region30: #{tpu_custom_call.1} parent=1 // pred_check
      _
    $region31: #{tpu_custom_call.1} parent=1 // pred_check_branch
      %95 = sbr.rel (0) target = $region33
    $region32: #{tpu_custom_call.1} parent=1 // pred_region
      %96 = dma.done [#allocation4], 128
    $region33: #{tpu_custom_call.1} parent=1 // pred_fallthru
      _
    %97 = vsyncpa [#allocation3], 1
    %98 = vsyncpa [#allocation6], 1
    %99 = vsyncpa [#allocation4], 1

</llo_original>
